<compile_context>
chip_gen: v7x
topology: tpu7x:2x2x1
jax: 0.10.0
libtpu: 0.0.40
codegen_flags: <defaults>
</compile_context>

<pallas_src>
import functools

import jax
import jax.numpy as jnp
from jax.experimental import pallas as pl
from jax.experimental.pallas import tpu as pltpu

IGNORE_INDEX = 255


def _loss_kernel(x_ref, t_ref, o_ref, acc_cnt_ref, acc_s_ref, *, upper_bound, norm):
    """One (image, pixel-tile) grid step."""
    j = pl.program_id(1)
    nj = pl.num_programs(1)

    @pl.when(j == 0)
    def _init():
        acc_cnt_ref[...] = jnp.zeros_like(acc_cnt_ref)
        acc_s_ref[...] = jnp.zeros_like(acc_s_ref)

    logits = x_ref[0].astype(jnp.float32)          # (C, THW), cast in-kernel
    tgt = t_ref[0]                                 # (1, THW) int32
    C, THW = logits.shape

    # log-softmax over the class (sublane) axis
    m = jnp.max(logits, axis=0, keepdims=True)                               # (1, THW)
    lse = jnp.log(jnp.sum(jnp.exp(logits - m), axis=0, keepdims=True)) + m   # (1, THW)

    # one-hot of targets (ignore_index=255 matches no class row -> drops out)
    class_ids = jax.lax.broadcasted_iota(jnp.int32, (C, THW), 0)
    onehot = (tgt == class_ids).astype(jnp.float32)                          # (C, THW)
    # -logprob fused at the selected class; no standalone (C, THW) logprob kept
    sel_nll = onehot * (lse - logits)                                        # (C, THW)

    # Lane-folded accumulation into (C, 128) scratch: per-tile work stays
    # elementwise (VPU); the cross-lane reduce is deferred to the finalizer.
    cnt = acc_cnt_ref[...]
    s = acc_s_ref[...]
    for k in range(THW // 128):                    # THW is a multiple of 128 (wrapper pads)
        sl = slice(k * 128, (k + 1) * 128)
        cnt = cnt + onehot[:, sl]
        s = s + sel_nll[:, sl]
    acc_cnt_ref[...] = cnt
    acc_s_ref[...] = s

    @pl.when(j == nj - 1)
    def _finalize():
        counts = jnp.sum(acc_cnt_ref[...], axis=1, keepdims=True)   # (C, 1)
        s_sum = jnp.sum(acc_s_ref[...], axis=1, keepdims=True)      # (C, 1)
        total = jnp.sum(counts)
        frac = counts / total     # density histogram (np.histogram normed=True)
        if norm:
            w = jnp.where(frac != 0.0, upper_bound / frac, 0.0) + 1.0
        else:
            w = jnp.where(frac != 0.0, upper_bound * (1.0 - frac), 0.0) + 1.0
        num = jnp.sum(w * s_sum)        # per-class reductions; no (C, HW) temp
        den = jnp.sum(w * counts)
        # TODO(synk): an all-ignore image gives den==0 -> NaN, same as the
        # PyTorch reference; add a guard here if such images can occur.
        loss_i = num / den
        o_ref[...] = jnp.broadcast_to(loss_i, o_ref.shape)          # lane-dense write


def _choose_tile(hw, target):
    """Pick a pixel tile THW (multiple of 128) and a padded HW it divides."""
    hw_lane = ((hw + 127) // 128) * 128
    thw = max(128, (min(target, hw_lane) // 128) * 128)
    hw_pad = ((hw_lane + thw - 1) // thw) * thw
    return hw_pad, thw


def image_based_cross_entropy_loss_2d(inputs, targets, *, num_classes,
                                      upper_bound=1.0, norm=False,
                                      pixel_tile=8192):
    """inputs: (N, C, H, W) logits (any float dtype); targets: (N, H, W) ints (255=ignore)."""
    N, C, H, W = inputs.shape
    assert C == num_classes
    HW = H * W
    hw_pad, thw = _choose_tile(HW, pixel_tile)
    num_j = hw_pad // thw

    # No dtype upcast here: keep logits in their native dtype (bf16 stays bf16);
    # the f32 cast happens per tile inside the kernel.
    x = inputs.reshape(N, C, HW)
    t = targets.reshape(N, 1, HW)
    if t.dtype != jnp.int32:
        t = t.astype(jnp.int32)
    if hw_pad != HW:
        # padded pixels get ignore_index -> zero one-hot -> contribute nothing
        x = jnp.pad(x, ((0, 0), (0, 0), (0, hw_pad - HW)))
        t = jnp.pad(t, ((0, 0), (0, 0), (0, hw_pad - HW)),
                    constant_values=IGNORE_INDEX)

    kernel = functools.partial(_loss_kernel, upper_bound=float(upper_bound), norm=norm)

    out = pl.pallas_call(
        kernel,
        out_shape=jax.ShapeDtypeStruct((N, 8, 128), jnp.float32),
        grid_spec=pltpu.PrefetchScalarGridSpec(
            num_scalar_prefetch=0,
            grid=(N, num_j),
            in_specs=[
                pl.BlockSpec((1, C, thw), lambda i, j: (i, 0, j)),
                pl.BlockSpec((1, 1, thw), lambda i, j: (i, 0, j)),
            ],
            out_specs=pl.BlockSpec((1, 8, 128), lambda i, j: (i, 0, 0)),
            scratch_shapes=[
                pltpu.VMEM((C, 128), jnp.float32),   # per-class pixel counts (lane-folded)
                pltpu.VMEM((C, 128), jnp.float32),   # per-class -logprob sums (lane-folded)
            ],
        ),
        compiler_params=pltpu.CompilerParams(
            # per-image output blocks -> the image axis can be sharded across
            # TensorCores (v7x); the pixel-tile (reduction) axis stays sequential.
            dimension_semantics=("parallel", "arbitrary"),
            vmem_limit_bytes=32 * 1024 * 1024,
        ),
    )(x, t)
    # sum of per-image losses (lane 0 of each image's lane-dense output block)
    return jnp.sum(out[:, 0, 0])


def _reference_loss(inputs, targets, *, num_classes, upper_bound=1.0, norm=False):
    """Pure-JAX reference mirroring the PyTorch module."""
    N, C, H, W = inputs.shape
    total = jnp.float32(0.0)
    for i in range(N):
        x = inputs[i].astype(jnp.float32).reshape(C, -1)          # (C, HW)
        t = targets[i].reshape(-1)                                # (HW,)
        logprob = jax.nn.log_softmax(x, axis=0)
        valid = (t != IGNORE_INDEX)
        onehot = (t[None, :] == jnp.arange(C)[:, None]).astype(jnp.float32)
        counts = onehot.sum(axis=1)
        frac = counts / counts.sum()
        if norm:
            w = jnp.where(frac != 0, upper_bound * (1.0 / frac), 0.0) + 1.0
        else:
            w = jnp.where(frac != 0, upper_bound * (1.0 - frac), 0.0) + 1.0
        pix_w = jnp.where(valid, w[jnp.clip(t, 0, C - 1)], 0.0)
        pix_lp = jnp.take_along_axis(logprob, jnp.clip(t, 0, C - 1)[None, :], axis=0)[0]
        total = total + jnp.sum(-pix_w * pix_lp) / jnp.sum(pix_w)
    return total


if __name__ == "__main__":
    key = jax.random.PRNGKey(0)
    k1, k2, k3 = jax.random.split(key, 3)

    N, C, H, W = 2, 4, 16, 16
    inputs = jax.random.normal(k1, (N, C, H, W), dtype=jnp.float32)
    targets = jax.random.randint(k2, (N, H, W), 0, C, dtype=jnp.int32)
    # sprinkle in some ignore_index pixels
    ignore_mask = jax.random.uniform(k3, (N, H, W)) < 0.1
    targets = jnp.where(ignore_mask, IGNORE_INDEX, targets)

    ref = _reference_loss(inputs, targets, num_classes=C, upper_bound=1.0, norm=False)

    # default tile (single pixel tile at this small size)
    loss = image_based_cross_entropy_loss_2d(
        inputs, targets, num_classes=C, upper_bound=1.0, norm=False)
    loss = jax.block_until_ready(loss)
    assert jnp.allclose(loss, ref, rtol=1e-5, atol=1e-5), (loss, ref)

    # small pixel tile to exercise the multi-tile accumulation path
    loss_tiled = image_based_cross_entropy_loss_2d(
        inputs, targets, num_classes=C, upper_bound=1.0, norm=False, pixel_tile=128)
    loss_tiled = jax.block_until_ready(loss_tiled)
    assert jnp.allclose(loss_tiled, ref, rtol=1e-5, atol=1e-5), (loss_tiled, ref)

    print("KERNEL_OK")
</pallas_src>

<mosaic_0001>
module attributes {stable_mosaic.version = 11 : i64} {
  func.func @_loss_kernel(%arg0: i32, %arg1: i32, %arg2: memref<1x4x256xf32, #tpu.memory_space<vmem>>, %arg3: memref<1x1x256xi32, #tpu.memory_space<vmem>>, %arg4: memref<1x8x128xf32, #tpu.memory_space<vmem>>, %arg5: memref<4x128xf32, #tpu.memory_space<vmem>>, %arg6: memref<4x128xf32, #tpu.memory_space<vmem>>) attributes {dimension_semantics = [#tpu.dimension_semantics<parallel>, #tpu.dimension_semantics<arbitrary>], iteration_bounds = array<i64: 2, 1>, scalar_prefetch = 0 : i64, scratch_operands = 2 : i64, tpu.core_type = #tpu.core_type<tc>, window_params = [{transform_indices = @transform_0, window_bounds = array<i64: 1, 4, 256>}, {transform_indices = @transform_1, window_bounds = array<i64: 1, 1, 256>}, {transform_indices = @transform_2, window_bounds = array<i64: 1, 8, 128>}]} {
    %c0_i32 = arith.constant 0 : i32
    %0 = arith.cmpi eq, %arg1, %c0_i32 : i32
    %1 = arith.extui %0 : i1 to i32
    %c0_i32_0 = arith.constant 0 : i32
    %2 = arith.cmpi ne, %1, %c0_i32_0 : i32
    scf.if %2 {
      %cst_17 = arith.constant 0.000000e+00 : f32
      %39 = vector.broadcast %cst_17 : f32 to vector<4x128xf32>
      %c0_18 = arith.constant 0 : index
      %c0_19 = arith.constant 0 : index
      %40 = vector.load %arg5[%c0_18, %c0_19] : memref<4x128xf32, #tpu.memory_space<vmem>>, vector<4x128xf32>
      tpu.vector_store %arg5[%c0_18, %c0_19], %39 {strides = array<i32>} : memref<4x128xf32, #tpu.memory_space<vmem>>, vector<4x128xf32>,
      %cst_20 = arith.constant 0.000000e+00 : f32
      %41 = vector.broadcast %cst_20 : f32 to vector<4x128xf32>
      %c0_21 = arith.constant 0 : index
      %c0_22 = arith.constant 0 : index
      %42 = vector.load %arg6[%c0_21, %c0_22] : memref<4x128xf32, #tpu.memory_space<vmem>>, vector<4x128xf32>
      tpu.vector_store %arg6[%c0_21, %c0_22], %41 {strides = array<i32>} : memref<4x128xf32, #tpu.memory_space<vmem>>, vector<4x128xf32>,
    } else {
    }
    %c0 = arith.constant 0 : index
    %c0_1 = arith.constant 0 : index
    %c0_2 = arith.constant 0 : index
    %3 = vector.load %arg2[%c0, %c0_1, %c0_2] : memref<1x4x256xf32, #tpu.memory_space<vmem>>, vector<1x4x256xf32>
    %4 = vector.shape_cast %3 : vector<1x4x256xf32> to vector<4x256xf32>
    %c0_3 = arith.constant 0 : index
    %c0_4 = arith.constant 0 : index
    %c0_5 = arith.constant 0 : index
    %5 = vector.load %arg3[%c0_3, %c0_4, %c0_5] : memref<1x1x256xi32, #tpu.memory_space<vmem>>, vector<1x1x256xi32>
    %6 = vector.shape_cast %5 : vector<1x1x256xi32> to vector<1x256xi32>
    %cst = arith.constant dense<0xFF800000> : vector<256xf32>
    %7 = vector.multi_reduction <maximumf>, %4, %cst [0] : vector<4x256xf32> to vector<256xf32>
    %8 = vector.shape_cast %7 : vector<256xf32> to vector<1x256xf32>
    %9 = vector.broadcast %8 : vector<1x256xf32> to vector<4x256xf32>
    %10 = arith.subf %4, %9 : vector<4x256xf32>
    %11 = math.exp %10 : vector<4x256xf32>
    %cst_6 = arith.constant dense<0.000000e+00> : vector<256xf32>
    %12 = vector.multi_reduction <add>, %11, %cst_6 [0] : vector<4x256xf32> to vector<256xf32>
    %13 = vector.shape_cast %12 : vector<256xf32> to vector<1x256xf32>
    %14 = math.log %13 : vector<1x256xf32>
    %15 = arith.addf %14, %8 : vector<1x256xf32>
    %16 = tpu.iota {dimensions = array<i32: 0>} : vector<4x256xi32>
    %17 = vector.broadcast %6 : vector<1x256xi32> to vector<4x256xi32>
    %18 = arith.cmpi eq, %17, %16 : vector<4x256xi32>
    %19 = arith.extui %18 : vector<4x256xi1> to vector<4x256xi32>
    %20 = arith.sitofp %19 : vector<4x256xi32> to vector<4x256xf32>
    %21 = vector.broadcast %15 : vector<1x256xf32> to vector<4x256xf32>
    %22 = arith.subf %21, %4 : vector<4x256xf32>
    %23 = arith.mulf %20, %22 : vector<4x256xf32>
    %c0_7 = arith.constant 0 : index
    %c0_8 = arith.constant 0 : index
    %24 = vector.load %arg5[%c0_7, %c0_8] : memref<4x128xf32, #tpu.memory_space<vmem>>, vector<4x128xf32>
    %c0_9 = arith.constant 0 : index
    %c0_10 = arith.constant 0 : index
    %25 = vector.load %arg6[%c0_9, %c0_10] : memref<4x128xf32, #tpu.memory_space<vmem>>, vector<4x128xf32>
    %26 = vector.extract_strided_slice %20 {offsets = [0, 0], sizes = [4, 128], strides = [1, 1]} : vector<4x256xf32> to vector<4x128xf32>
    %27 = arith.addf %24, %26 : vector<4x128xf32>
    %28 = vector.extract_strided_slice %23 {offsets = [0, 0], sizes = [4, 128], strides = [1, 1]} : vector<4x256xf32> to vector<4x128xf32>
    %29 = arith.addf %25, %28 : vector<4x128xf32>
    %30 = vector.extract_strided_slice %20 {offsets = [0, 128], sizes = [4, 128], strides = [1, 1]} : vector<4x256xf32> to vector<4x128xf32>
    %31 = arith.addf %27, %30 : vector<4x128xf32>
    %32 = vector.extract_strided_slice %23 {offsets = [0, 128], sizes = [4, 128], strides = [1, 1]} : vector<4x256xf32> to vector<4x128xf32>
    %33 = arith.addf %29, %32 : vector<4x128xf32>
    %c0_11 = arith.constant 0 : index
    %c0_12 = arith.constant 0 : index
    %34 = vector.load %arg5[%c0_11, %c0_12] : memref<4x128xf32, #tpu.memory_space<vmem>>, vector<4x128xf32>
    tpu.vector_store %arg5[%c0_11, %c0_12], %31 {strides = array<i32>} : memref<4x128xf32, #tpu.memory_space<vmem>>, vector<4x128xf32>,
    %c0_13 = arith.constant 0 : index
    %c0_14 = arith.constant 0 : index
    %35 = vector.load %arg6[%c0_13, %c0_14] : memref<4x128xf32, #tpu.memory_space<vmem>>, vector<4x128xf32>
    tpu.vector_store %arg6[%c0_13, %c0_14], %33 {strides = array<i32>} : memref<4x128xf32, #tpu.memory_space<vmem>>, vector<4x128xf32>,
    %c0_i32_15 = arith.constant 0 : i32
    %36 = arith.cmpi eq, %arg1, %c0_i32_15 : i32
    %37 = arith.extui %36 : i1 to i32
    %c0_i32_16 = arith.constant 0 : i32
    %38 = arith.cmpi ne, %37, %c0_i32_16 : i32
    scf.if %38 {
      %c0_17 = arith.constant 0 : index
      %c0_18 = arith.constant 0 : index
      %39 = vector.load %arg5[%c0_17, %c0_18] : memref<4x128xf32, #tpu.memory_space<vmem>>, vector<4x128xf32>
      %cst_19 = arith.constant dense<0.000000e+00> : vector<4xf32>
      %40 = vector.multi_reduction <add>, %39, %cst_19 [1] : vector<4x128xf32> to vector<4xf32>
      %41 = vector.shape_cast %40 : vector<4xf32> to vector<4x1xf32>
      %c0_20 = arith.constant 0 : index
      %c0_21 = arith.constant 0 : index
      %42 = vector.load %arg6[%c0_20, %c0_21] : memref<4x128xf32, #tpu.memory_space<vmem>>, vector<4x128xf32>
      %cst_22 = arith.constant dense<0.000000e+00> : vector<4xf32>
      %43 = vector.multi_reduction <add>, %42, %cst_22 [1] : vector<4x128xf32> to vector<4xf32>
      %44 = vector.shape_cast %43 : vector<4xf32> to vector<4x1xf32>
      %45 = vector.shape_cast %41 : vector<4x1xf32> to vector<1x4x1xf32>
      %cst_23 = arith.constant dense<0.000000e+00> : vector<1xf32>
      %46 = vector.multi_reduction <add>, %45, %cst_23 [1, 2] : vector<1x4x1xf32> to vector<1xf32>
      %47 = vector.shape_cast %46 : vector<1xf32> to vector<1x1x1xf32>
      %48 = vector.extract %47[0, 0, 0] : f32 from vector<1x1x1xf32>
      %49 = vector.broadcast %48 : f32 to vector<4x1xf32>
      %50 = arith.divf %41, %49 : vector<4x1xf32>
      %cst_24 = arith.constant 0.000000e+00 : f32
      %51 = vector.broadcast %cst_24 : f32 to vector<4x1xf32>
      %52 = arith.cmpf one, %50, %51 : vector<4x1xf32>
      %cst_25 = arith.constant 1.000000e+00 : f32
      %53 = vector.broadcast %cst_25 : f32 to vector<4x1xf32>
      %54 = arith.subf %53, %50 : vector<4x1xf32>
      %cst_26 = arith.constant 1.000000e+00 : f32
      %55 = vector.broadcast %cst_26 : f32 to vector<4x1xf32>
      %56 = arith.mulf %55, %54 : vector<4x1xf32>
      %cst_27 = arith.constant 0.000000e+00 : f32
      %57 = vector.broadcast %cst_27 : f32 to vector<4x1xf32>
      %58 = arith.select %52, %56, %57 : vector<4x1xi1>, vector<4x1xf32>
      %cst_28 = arith.constant 1.000000e+00 : f32
      %59 = vector.broadcast %cst_28 : f32 to vector<4x1xf32>
      %60 = arith.addf %58, %59 : vector<4x1xf32>
      %61 = arith.mulf %60, %44 : vector<4x1xf32>
      %62 = vector.shape_cast %61 : vector<4x1xf32> to vector<1x4x1xf32>
      %cst_29 = arith.constant dense<0.000000e+00> : vector<1xf32>
      %63 = vector.multi_reduction <add>, %62, %cst_29 [1, 2] : vector<1x4x1xf32> to vector<1xf32>
      %64 = vector.shape_cast %63 : vector<1xf32> to vector<1x1x1xf32>
      %65 = vector.extract %64[0, 0, 0] : f32 from vector<1x1x1xf32>
      %66 = arith.mulf %60, %41 : vector<4x1xf32>
      %67 = vector.shape_cast %66 : vector<4x1xf32> to vector<1x4x1xf32>
      %cst_30 = arith.constant dense<0.000000e+00> : vector<1xf32>
      %68 = vector.multi_reduction <add>, %67, %cst_30 [1, 2] : vector<1x4x1xf32> to vector<1xf32>
      %69 = vector.shape_cast %68 : vector<1xf32> to vector<1x1x1xf32>
      %70 = vector.extract %69[0, 0, 0] : f32 from vector<1x1x1xf32>
      %71 = arith.divf %65, %70 : f32
      %72 = vector.broadcast %71 : f32 to vector<1x8x128xf32>
      %c0_31 = arith.constant 0 : index
      %c0_32 = arith.constant 0 : index
      %c0_33 = arith.constant 0 : index
      %73 = vector.load %arg4[%c0_31, %c0_32, %c0_33] : memref<1x8x128xf32, #tpu.memory_space<vmem>>, vector<1x8x128xf32>
      tpu.vector_store %arg4[%c0_31, %c0_32, %c0_33], %72 {strides = array<i32>} : memref<1x8x128xf32, #tpu.memory_space<vmem>>, vector<1x8x128xf32>,
    } else {
    }
    return
  }
  func.func @transform_0(%arg0: i32, %arg1: i32) -> (i32, i32, i32) {
    %c0_i32 = arith.constant 0 : i32
    %c0_i32_0 = arith.constant 0 : i32
    return %arg0, %c0_i32, %arg1 : i32, i32, i32
  }
  func.func @transform_1(%arg0: i32, %arg1: i32) -> (i32, i32, i32) {
    %c0_i32 = arith.constant 0 : i32
    %c0_i32_0 = arith.constant 0 : i32
    return %arg0, %c0_i32, %arg1 : i32, i32, i32
  }
  func.func @transform_2(%arg0: i32, %arg1: i32) -> (i32, i32, i32) {
    %c0_i32 = arith.constant 0 : i32
    %c0_i32_0 = arith.constant 0 : i32
    %c0_i32_1 = arith.constant 0 : i32
    return %arg0, %c0_i32, %c0_i32_0 : i32, i32, i32
  }
}

</mosaic_0001>

<llo_original>
// kernel: tpu_custom_call.1
$region0: #{tpu_custom_call.1}
  #allocation0 [shape = 'u32[]', space=smem, size = 0x4, offset = 0x4, fixed_abs, tag = 'smem constant byte address 0x4 - core index']
  #allocation1 [shape = 'u32[144,128]{1,0:T(1,128)}', space=vmem, size = 0x12000, scoped, tag = 'internal scratch']
  #allocation2 [shape = 'f32[4,128]{1,0:T(4,128)}', space=vmem, size = 0x800, scoped, tag = 'scratch operand']
  #allocation3 [shape = 'f32[4,128]{1,0:T(4,128)}', space=vmem, size = 0x800, scoped, tag = 'scratch operand']
  %s0 = inlined_call_operand.hbm [shape: f32[2,4,256], index: 0, kind: input, shape index: {}]
  %s1 = inlined_call_operand.hbm [shape: s32[2,1,256], index: 1, kind: input, shape index: {}]
  %s2 = inlined_call_operand.hbm [shape: f32[2,8,128], index: 2, kind: output, shape index: {}]
  %s3 = sld [smem:[#allocation0]]
  $region57: #{tpu_custom_call.1} parent=0
    _
  %s5 = ssub.s32 1, %s3
  %s6 = scalar_select 0, %s5, %s3
  $region1: #{tpu_custom_call.1} parent=0
    #allocation4 [shape = 'u8[8192]{0}', space=vmem, size = 0x2000, scoped, tag = 'input window, operand 0']
    #allocation5 [shape = 's32[2]{0}', space=sflag, size = 0x8, scoped, tag = 'scoped memory for tpu_custom_call.1']
    #allocation6 [shape = 's32[2]{0}', space=sflag, size = 0x8, scoped, tag = 'scoped memory for tpu_custom_call.1']
    #allocation7 [shape = 'u8[2048]{0}', space=vmem, size = 0x800, scoped, tag = 'input window, operand 1']
    #allocation8 [shape = 's32[2]{0}', space=sflag, size = 0x8, scoped, tag = 'scoped memory for tpu_custom_call.1']
    #allocation9 [shape = 'u8[8192]{0}', space=vmem, size = 0x2000, scoped, tag = 'output window, operand 0']
    %7 = vsyncpa [#allocation5], 0
    %s8 = scalar_lea.sflag [#allocation5], 1
    %9 = vsyncpa %s8, 0
    %10 = vsyncpa [#allocation8], 0
    %s11 = scalar_lea.sflag [#allocation8], 1
    %12 = vsyncpa %s11, 0
    %13 = vsyncpa [#allocation6], 0
    %s14 = scalar_lea.sflag [#allocation6], 1
    %15 = vsyncpa %s14, 0
    loop: start=0, step=1, limit=4
    $region2: #{tpu_custom_call.1} parent=1 // loop_pre_header
      _
    $region3: #{tpu_custom_call.1} parent=1 // loop_header
      %s17 = sphi 0, %s21
      %p18 = scmp.ge.s32.totalorder %s17, 4
      %s24 = sphi 0, %s36
      %s25 = sphi 0, %s32
      %s26 = sphi 0, %s24
      %s27 = sphi 0, %s25
      %s28 = sphi 0, %s26
      %s29 = sphi 0, %s27
      %s41 = sphi 0, %s43
      %s44 = sphi 0, %s41
      %s45 = sphi 0, %s44
      %s61 = sphi 0, %s45
      %s69 = sphi 0, %s71
      %s72 = sphi 0, %s69
      %s73 = sphi 0, %s72
      %s89 = sphi 0, %s73
      %s95 = sphi 0, %s97
      %s98 = sphi 0, %s95
      %s99 = sphi 0, %s98
      %s115 = sphi 0, %s99
    $region4: #{tpu_custom_call.1} parent=1 // loop_header_branch
      %20 = sbr.rel (%p18) target = $region8
    $region5: #{tpu_custom_call.1} parent=1 // loop_body
      %s22 = ssub.s32 %s17, 1
      %s23 = ssub.s32 %s17, 2
      %s30 = sadd.s32 1, %s25
      %p31 = scmp.ge.s32.totalorder %s30, 1
      %s32 = scalar_select %p31, 0, %s30
      %s33 = sadd.s32 1, %s24
      %s34 = scalar_select %p31, %s33, %s24
      %p35 = scmp.ge.s32.totalorder %s34, 2
      %s36 = scalar_select %p35, 0, %s34
      %s37 = ssub.s32 %s24, %s36
      %s38 = ssub.s32 %s25, %s32
      %s39 = sor.u32 %s37, %s38
      %p40 = scmp.eq.s32.totalorder %s39, 0
      %s42 = sadd.s32 %s41, 1
      %s43 = scalar_select %p40, %s41, %s42
      %p46 = pneg %p40
      %p47 = scmp.eq.s32.totalorder %s17, 1
      %p48 = por %p46, %p47
      %p49 = scmp.ne.s32.totalorder %s41, %s44
      %p50 = scmp.eq.s32.totalorder %s17, 0
      %p51 = por %p49, %p50
      %p52 = scmp.ne.s32.totalorder %s41, %s44
      %p53 = scmp.eq.s32.totalorder %s22, 1
      %p54 = por %p52, %p53
      %p55 = scmp.ne.s32.totalorder %s44, %s45
      %p56 = scmp.eq.s32.totalorder %s22, 0
      %p57 = por %p55, %p56
      %p58 = scmp.ne.s32.totalorder %s44, %s45
      %p59 = scmp.eq.s32.totalorder %s23, 1
      %p60 = por %p58, %p59
      %p62 = scmp.ne.s32.totalorder %s45, %s61
      %p63 = scmp.eq.s32.totalorder %s23, 0
      %p64 = por %p62, %p63
      %s65 = ssub.s32 %s24, %s36
      %s66 = ssub.s32 %s25, %s32
      %s67 = sor.u32 %s65, %s66
      %p68 = scmp.eq.s32.totalorder %s67, 0
      %s70 = sadd.s32 %s69, 1
      %s71 = scalar_select %p68, %s69, %s70
      %p74 = pneg %p68
      %p75 = scmp.eq.s32.totalorder %s17, 1
      %p76 = por %p74, %p75
      %p77 = scmp.ne.s32.totalorder %s69, %s72
      %p78 = scmp.eq.s32.totalorder %s17, 0
      %p79 = por %p77, %p78
      %p80 = scmp.ne.s32.totalorder %s69, %s72
      %p81 = scmp.eq.s32.totalorder %s22, 1
      %p82 = por %p80, %p81
      %p83 = scmp.ne.s32.totalorder %s72, %s73
      %p84 = scmp.eq.s32.totalorder %s22, 0
      %p85 = por %p83, %p84
      %p86 = scmp.ne.s32.totalorder %s72, %s73
      %p87 = scmp.eq.s32.totalorder %s23, 1
      %p88 = por %p86, %p87
      %p90 = scmp.ne.s32.totalorder %s73, %s89
      %p91 = scmp.eq.s32.totalorder %s23, 0
      %p92 = por %p90, %p91
      %s93 = ssub.s32 %s24, %s36
      %p94 = scmp.eq.s32.totalorder %s93, 0
      %s96 = sadd.s32 %s95, 1
      %s97 = scalar_select %p94, %s95, %s96
      %p100 = pneg %p94
      %p101 = scmp.eq.s32.totalorder %s17, 1
      %p102 = por %p100, %p101
      %p103 = scmp.ne.s32.totalorder %s95, %s98
      %p104 = scmp.eq.s32.totalorder %s17, 0
      %p105 = por %p103, %p104
      %p106 = scmp.ne.s32.totalorder %s95, %s98
      %p107 = scmp.eq.s32.totalorder %s22, 1
      %p108 = por %p106, %p107
      %p109 = scmp.ne.s32.totalorder %s98, %s99
      %p110 = scmp.eq.s32.totalorder %s22, 0
      %p111 = por %p109, %p110
      %p112 = scmp.ne.s32.totalorder %s98, %s99
      %p113 = scmp.eq.s32.totalorder %s23, 1
      %p114 = por %p112, %p113
      %p116 = scmp.ne.s32.totalorder %s99, %s115
      %p117 = scmp.eq.s32.totalorder %s23, 0
      %p118 = por %p116, %p117
      %p119 = scmp.le.s32.totalorder 1, %s17
      %p120 = scmp.lt.s32.totalorder %s17, 3
      %p121 = pnand %p119, %p120
      %p122 = pneg %p121
      // Predicated region
      $region9: #{tpu_custom_call.1} parent=5 // pred_check
        _
      $region10: #{tpu_custom_call.1} parent=5 // pred_check_branch
        %124 = sbr.rel (%p121) target = $region12
      $region11: #{tpu_custom_call.1} parent=5 // pred_region
        %s125 = ssub.s32 %s17, 1
      $region12: #{tpu_custom_call.1} parent=5 // pred_fallthru
        _
      %p126 = scmp.lt.s32.totalorder %s17, 2
      // Predicated region
      $region13: #{tpu_custom_call.1} parent=5 // pred_check
        %p127 = pneg %p126
      $region14: #{tpu_custom_call.1} parent=5 // pred_check_branch
        %129 = sbr.rel (%p127) target = $region16
      $region15: #{tpu_custom_call.1} parent=5 // pred_region
        // Predicated region
        $region17: #{tpu_custom_call.1} parent=15 // pred_check
          %p130 = pneg %p51
        $region18: #{tpu_custom_call.1} parent=15 // pred_check_branch
          %132 = sbr.rel (%p130) target = $region20
        $region19: #{tpu_custom_call.1} parent=15 // pred_region
          %s133 = sand.u32 %s41, 1
          %s134 = scalar_lea.sflag [#allocation5], %s133
          %s135 = sand.u32 %s41, 1
          %s136 = smul.addr %s135, 8
          %s137 = scalar_lea.vmem [#allocation4], %s136
          %s138 = smul.u32 2, %s25
          %s140 = ssub.s32 128, 128
          %141 = vsyncadd %s134, %s140
          %s142 = smul.addr %s24, 2
          %s143 = sadd.s32 %s138, %s142
          %s144 = smul.addr %s143, 64
          %s145 = scalar_lea.hbm %s0, %s144
          %s147 = sshll.u32 %s137, 4
          %s148 = int_to_ptr.vmem [resolvable:$true] %s147
          %150 = dma.hbm_to_vmem [thread:$0]  %s145, 128, %s148, %s134
        $region20: #{tpu_custom_call.1} parent=15 // pred_fallthru
          _
        // Predicated region
        $region21: #{tpu_custom_call.1} parent=15 // pred_check
          %p151 = pneg %p79
        $region22: #{tpu_custom_call.1} parent=15 // pred_check_branch
          %153 = sbr.rel (%p151) target = $region24
        $region23: #{tpu_custom_call.1} parent=15 // pred_region
          %s154 = sand.u32 %s69, 1
          %s155 = scalar_lea.sflag [#allocation8], %s154
          %s156 = sand.u32 %s69, 1
          %s157 = smul.addr %s156, 2
          %s158 = scalar_lea.vmem [#allocation7], %s157
          %s159 = smul.u32 2, %s25
          %s161 = ssub.s32 32, 32
          %162 = vsyncadd %s155, %s161
          %s163 = smul.addr %s24, 2
          %s164 = sadd.s32 %s159, %s163
          %s165 = smul.addr %s164, 16
          %s166 = scalar_lea.hbm %s1, %s165
          %s168 = sshll.u32 %s158, 4
          %s169 = int_to_ptr.vmem [resolvable:$true] %s168
          %171 = dma.hbm_to_vmem [thread:$0]  %s166, 32, %s169, %s155
        $region24: #{tpu_custom_call.1} parent=15 // pred_fallthru
          _
      $region16: #{tpu_custom_call.1} parent=5 // pred_fallthru
        _
      %p172 = scmp.le.s32.totalorder 1, %s17
      %p173 = scmp.lt.s32.totalorder %s17, 3
      %p174 = pnand %p172, %p173
      %p175 = pneg %p174
      // Predicated region
      $region25: #{tpu_custom_call.1} parent=5 // pred_check
        _
      $region26: #{tpu_custom_call.1} parent=5 // pred_check_branch
        %177 = sbr.rel (%p174) target = $region28
      $region27: #{tpu_custom_call.1} parent=5 // pred_region
        %s178 = ssub.s32 %s17, 1
        %s179 = sand.u32 %s44, 1
        %s180 = scalar_lea.sflag [#allocation5], %s179
        %s181 = sand.u32 %s44, 1
        %s182 = smul.addr %s181, 8
        %s183 = scalar_lea.vmem [#allocation4], %s182
        // Predicated region
        $region29: #{tpu_custom_call.1} parent=27 // pred_check
          %p184 = pneg %p57
        $region30: #{tpu_custom_call.1} parent=27 // pred_check_branch
          %186 = sbr.rel (%p184) target = $region32
        $region31: #{tpu_custom_call.1} parent=27 // pred_region
          %187 = dma.done %s180, 128
        $region32: #{tpu_custom_call.1} parent=27 // pred_fallthru
          _
        %s188 = sand.u32 %s72, 1
        %s189 = scalar_lea.sflag [#allocation8], %s188
        %s190 = sand.u32 %s72, 1
        %s191 = smul.addr %s190, 2
        %s192 = scalar_lea.vmem [#allocation7], %s191
        // Predicated region
        $region33: #{tpu_custom_call.1} parent=27 // pred_check
          %p193 = pneg %p85
        $region34: #{tpu_custom_call.1} parent=27 // pred_check_branch
          %195 = sbr.rel (%p193) target = $region36
        $region35: #{tpu_custom_call.1} parent=27 // pred_region
          %196 = dma.done %s189, 32
        $region36: #{tpu_custom_call.1} parent=27 // pred_fallthru
          _
        %s197 = sand.u32 %s44, 1
        %s198 = scalar_lea.sflag [#allocation5], %s197
        %s199 = sand.u32 %s44, 1
        %s200 = smul.addr %s199, 8
        %s201 = scalar_lea.vmem [#allocation4], %s200
        %p202 = pneg %p57
        %p203 = pneg %p54
        %s204 = sand.u32 %s72, 1
        %s205 = scalar_lea.sflag [#allocation8], %s204
        %s206 = sand.u32 %s72, 1
        %s207 = smul.addr %s206, 2
        %s208 = scalar_lea.vmem [#allocation7], %s207
        %p209 = pneg %p85
        %p210 = pneg %p82
        %p211 = pneg %p111
        %p212 = pneg %p108
        %s213 = sand.u32 %s98, 1
        %s214 = scalar_lea.sflag [#allocation6], %s213
        %s215 = sand.u32 %s98, 1
        %s216 = smul.addr %s215, 8
        %s217 = scalar_lea.vmem [#allocation9], %s216
        %s218 = smul.u32 2, %s27
        %s219 = smul.u32 2, %s27
        %p220 = scmp.eq.s32.totalorder %s27, 0
        // Predicated region
        $region37: #{tpu_custom_call.1} parent=27 // pred_check
          %p221 = pneg %p220
        $region38: #{tpu_custom_call.1} parent=27 // pred_check_branch
          %223 = sbr.rel (%p221) target = $region40
        $region39: #{tpu_custom_call.1} parent=27 // pred_region
          %224 = vst [vmem:[#allocation2] sm:$0xf] 0.0
          %225 = vst [vmem:[#allocation3] sm:$0xf] 0.0
        $region40: #{tpu_custom_call.1} parent=27 // pred_fallthru
          _
        %v226 = vld [vmem:[%s183] sm:$0xff]
        %v227 = vld [vmem:[%s192] sm:$0x3]
        %v229 = vcombine.high %v226, %v226
        %vm231 = vcmask 1043456
        %v232 = vsel %vm231, %v226, -inf
        %v233 = vrot.slane %v232, 4
        %v234 = vmax.f32 %v232, %v233
        %v235 = vrot.slane %v234, 2
        %v236 = vmax.f32 %v234, %v235
        %v237 = vrot.slane %v236, 1
        %v238 = vmax.f32 %v236, %v237
        %v239 = vsel %vm231, %v229, -inf
        %v240 = vrot.slane %v239, 4
        %v241 = vmax.f32 %v239, %v240
        %v242 = vrot.slane %v241, 2
        %v243 = vmax.f32 %v241, %v242
        %v244 = vrot.slane %v243, 1
        %v245 = vmax.f32 %v243, %v244
        %v248 = vcombine.low %v238, %v245
        %v250 = vsub.f32 %v226, %v248
        %v251 = vmul.f32 %v250, 1.442695
        %v252 = vpow.pop %v251
        %v254 = vcombine.high %v252, %v252
        %v256 = vsel %vm231, %v252, 0.0
        %v257 = vrot.slane %v256, 4
        %v258 = vadd.f32 %v256, %v257
        %v259 = vrot.slane %v258, 2
        %v260 = vadd.f32 %v258, %v259
        %v261 = vrot.slane %v260, 1
        %v262 = vadd.f32 %v260, %v261
        %v263 = vsel %vm231, %v254, 0.0
        %v264 = vrot.slane %v263, 4
        %v265 = vadd.f32 %v263, %v264
        %v266 = vrot.slane %v265, 2
        %v267 = vadd.f32 %v265, %v266
        %v268 = vrot.slane %v267, 1
        %v269 = vadd.f32 %v267, %v268
        %v270 = vlog2.pop %v262
        %v271 = vmul.f32 %v270, 0.6931472
        %v272 = vlog2.pop %v269
        %v273 = vmul.f32 %v272, 0.6931472
        %v274 = vadd.f32 %v271, %v238
        %v275 = vadd.f32 %v273, %v245
        %v276 = vlaneseq
        %v277 = vshrl.u32 %v276, 7
        %v278 = vlaneseq
        %v279 = vshrl.u32 %v278, 7
        %v280 = vsub.s32 0, %v279
        %v281 = vrot.slane %v227, %v280
        %v282 = vlaneseq
        %v283 = vshrl.u32 %v282, 7
        %v284 = vsub.s32 1, %v283
        %v285 = vrot.slane %v227, %v284
        %vm286 = vcmp.eq.s32.totalorder %v281, %v277
        %vm287 = vcmp.eq.s32.totalorder %v285, %v277
        %v288 = vsel %vm286, 1, 0
        %v289 = vsel %vm287, 1, 0
        %v290 = vcvt.s32.f32 %v288
        %v291 = vcvt.s32.f32 %v289
        %v292 = vsub.f32 %v274, %v226
        %v293 = vsub.f32 %v275, %v229
        %v294 = vmul.f32 %v290, %v292
        %v295 = vmul.f32 %v291, %v293
        %v296 = vld [vmem:[#allocation2] sm:$0xf]
        %v297 = vld [vmem:[#allocation3] sm:$0xf]
        %v298 = vadd.f32 %v296, %v290
        %v299 = vadd.f32 %v297, %v294
        %v300 = vadd.f32 %v298, %v291
        %v301 = vadd.f32 %v299, %v295
        %302 = vst [vmem:[#allocation2] sm:$0xf] %v300
        %303 = vst [vmem:[#allocation3] sm:$0xf] %v301
        // Predicated region
        $region41: #{tpu_custom_call.1} parent=27 // pred_check
          %p304 = pneg %p220
        $region42: #{tpu_custom_call.1} parent=27 // pred_check_branch
          %306 = sbr.rel (%p304) target = $region44
        $region43: #{tpu_custom_call.1} parent=27 // pred_region
          %v307 = vld [vmem:[#allocation2] sm:$0xf]
          %v308 = vsel %vm231, %v307, 0.0
          %309 = vadd.xlane.f32.xlu0 %v308
          %v310 = vpop.xlane.xlu0 %309
          %v311 = vld [vmem:[#allocation3] sm:$0xf]
          %v312 = vsel %vm231, %v311, 0.0
          %313 = vadd.xlane.f32.xlu0 %v312
          %v314 = vpop.xlane.xlu0 %313
          %vm315 = vcmask 3072
          %v316 = vsel %vm315, %v310, 0.0
          %317 = vadd.xlane.f32.xlu0 %v316
          %v318 = vpop.xlane.xlu0 %317
          %v319 = vrot.slane %v318, 4
          %v320 = vadd.f32 %v318, %v319
          %v321 = vrot.slane %v320, 2
          %v322 = vadd.f32 %v320, %v321
          %v323 = vrot.slane %v322, 1
          %v324 = vadd.f32 %v322, %v323
          %s325 = vtos %v324
          %v326 = vstv %s325
          %v327 = vrcp.pop %v326
          %v328 = vmul.f32 %v310, %v327
          %vm329 = vcmp.ne.f32.partialorder %v328, 0.0
          %v330 = vsub.f32 1.0, %v328
          %v331 = vsel %vm329, %v330, 0.0
          %v332 = vadd.f32 %v331, 1.0
          %v333 = vmul.f32 %v332, %v314
          %v334 = vsel %vm315, %v333, 0.0
          %335 = vadd.xlane.f32.xlu0 %v334
          %v336 = vpop.xlane.xlu0 %335
          %v337 = vrot.slane %v336, 4
          %v338 = vadd.f32 %v336, %v337
          %v339 = vrot.slane %v338, 2
          %v340 = vadd.f32 %v338, %v339
          %v341 = vrot.slane %v340, 1
          %v342 = vadd.f32 %v340, %v341
          %s343 = vtos %v342
          %v344 = vmul.f32 %v332, %v310
          %v345 = vsel %vm315, %v344, 0.0
          %346 = vadd.xlane.f32.xlu0 %v345
          %v347 = vpop.xlane.xlu0 %346
          %v348 = vrot.slane %v347, 4
          %v349 = vadd.f32 %v347, %v348
          %v350 = vrot.slane %v349, 2
          %v351 = vadd.f32 %v349, %v350
          %v352 = vrot.slane %v351, 1
          %v353 = vadd.f32 %v351, %v352
          %s354 = vtos %v353
          %v355 = vstv %s354
          %v356 = vrcp.pop %v355
          %s357 = vtos %v356
          %s358 = smul.f32 %s343, %s357
          %v359 = vstv %s358
          %360 = vst [vmem:[%s217] sm:$0xff] %v359
        $region44: #{tpu_custom_call.1} parent=27 // pred_fallthru
          _
        %s361 = sand.u32 %s98, 1
        %s362 = scalar_lea.sflag [#allocation6], %s361
        %s363 = sand.u32 %s98, 1
        %s364 = smul.addr %s363, 8
        %s365 = scalar_lea.vmem [#allocation9], %s364
        // Predicated region
        $region45: #{tpu_custom_call.1} parent=27 // pred_check
          %p366 = pneg %p108
        $region46: #{tpu_custom_call.1} parent=27 // pred_check_branch
          %368 = sbr.rel (%p366) target = $region48
        $region47: #{tpu_custom_call.1} parent=27 // pred_region
          %s370 = ssub.s32 128, 128
          %371 = vsyncadd %s362, %s370
          %s372 = smul.addr %s26, 128
          %s373 = scalar_lea.hbm %s2, %s372
          %s375 = sshll.u32 %s365, 4
          %s376 = int_to_ptr.vmem [resolvable:$true] %s375
          %378 = dma.vmem_to_hbm [thread:$0]  %s376, 128, %s373, %s362
        $region48: #{tpu_custom_call.1} parent=27 // pred_fallthru
          _
      $region28: #{tpu_custom_call.1} parent=5 // pred_fallthru
        _
      %p379 = scmp.le.s32.totalorder 2, %s17
      // Predicated region
      $region49: #{tpu_custom_call.1} parent=5 // pred_check
        %p380 = pneg %p379
      $region50: #{tpu_custom_call.1} parent=5 // pred_check_branch
        %382 = sbr.rel (%p380) target = $region52
      $region51: #{tpu_custom_call.1} parent=5 // pred_region
        %s383 = ssub.s32 %s17, 2
        // Predicated region
        $region53: #{tpu_custom_call.1} parent=51 // pred_check
          %p384 = pneg %p114
        $region54: #{tpu_custom_call.1} parent=51 // pred_check_branch
          %386 = sbr.rel (%p384) target = $region56
        $region55: #{tpu_custom_call.1} parent=51 // pred_region
          %s387 = sand.u32 %s99, 1
          %s388 = scalar_lea.sflag [#allocation6], %s387
          %s389 = sand.u32 %s99, 1
          %s390 = smul.addr %s389, 8
          %s391 = scalar_lea.vmem [#allocation9], %s390
          %392 = dma.done %s388, 128
        $region56: #{tpu_custom_call.1} parent=51 // pred_fallthru
          _
      $region52: #{tpu_custom_call.1} parent=5 // pred_fallthru
        _
    $region6: #{tpu_custom_call.1} parent=1 // loop_footer
      %s21 = sadd.s32 1, %s17
    $region7: #{tpu_custom_call.1} parent=1 // loop_footer_branch
      %16 = sbr.rel target = $region3
    $region8: #{tpu_custom_call.1} parent=1 // loop_exit
      _
    %393 = vsyncpa [#allocation5], 1
    %s394 = scalar_lea.sflag [#allocation5], 1
    %395 = vsyncpa %s394, 1
    %396 = vsyncpa [#allocation8], 1
    %s397 = scalar_lea.sflag [#allocation8], 1
    %398 = vsyncpa %s397, 1
    %399 = vsyncpa [#allocation6], 1
    %s400 = scalar_lea.sflag [#allocation6], 1
    %401 = vsyncpa %s400, 1

</llo_original>
